<compile_context>
chip_gen: v6e
topology: v6e:2x2x1
jax: 0.10.0
libtpu: 0.0.40
codegen_flags: <defaults>
</compile_context>

<pallas_src>
import jax
import jax.numpy as jnp
from jax.experimental import pallas as pl
from jax.experimental.pallas import tpu as pltpu


def _conv_stage_kernel(x_ref, w1, t1, w2, t2, w3, t3, feat_ref):
    """conv1-3 (+folded BN, ReLU) and max-pool over points for TB batch elems."""
    _, tb, n, k = x_ref.shape
    x = x_ref[0].reshape(tb * n, k).astype(jnp.bfloat16)          # (TB*N, K)

    h = jnp.dot(x, w1[...], preferred_element_type=jnp.float32)
    h = jnp.maximum(h + t1[...], 0.0)                             # (TB*N, 64)

    h = jnp.dot(h.astype(jnp.bfloat16), w2[...],
                preferred_element_type=jnp.float32)
    h = jnp.maximum(h + t2[...], 0.0)                             # (TB*N, 128)

    h = jnp.dot(h.astype(jnp.bfloat16), w3[...],
                preferred_element_type=jnp.float32)
    h = jnp.maximum(h + t3[...], 0.0)                             # (TB*N, 1024)

    # global max-pool over points (torch.max(x, 2)) per batch element
    feat_ref[0] = jnp.max(h.reshape(tb, n, 1024), axis=1)         # (TB, 1024)


def _fc_stage_kernel(f_ref, w4, t4, w5, t5, w6, t6, out_ref):
    """fc1-3 (+folded BN, ReLU) as one batched GEMM chain; t6 includes eye(K)."""
    f = f_ref[...].astype(jnp.bfloat16)                           # (B, 1024)

    h = jnp.dot(f, w4[...], preferred_element_type=jnp.float32)
    h = jnp.maximum(h + t4[...], 0.0)                             # (B, 512)

    h = jnp.dot(h.astype(jnp.bfloat16), w5[...],
                preferred_element_type=jnp.float32)
    h = jnp.maximum(h + t5[...], 0.0)                             # (B, 256)

    out_ref[...] = (jnp.dot(h.astype(jnp.bfloat16), w6[...],
                            preferred_element_type=jnp.float32)
                    + t6[...])                                    # (B, K*K)


def _const_spec(shape):
    zeros = (0,) * len(shape)
    return pl.BlockSpec(shape, lambda i, z=zeros: z)


def tnet_forward(x, params):
    """x: (B, N, K) float32. Returns (B, K, K) float32."""
    B, N, K = x.shape
    (w1, t1, w2, t2, w3, t3, w4, t4, w5, t5, w6, t6) = params

    # ---- stage 1: conv stack + max-pool, TB batch elements per grid step ----
    rows_target = 256                       # fill the MXU M dimension
    tb = max(1, min(B, rows_target // max(N, 1)))
    num_tiles = pl.cdiv(B, tb)
    b_pad = num_tiles * tb
    if b_pad != B:
        x = jnp.pad(x, ((0, b_pad - B), (0, 0), (0, 0)))
    x_tiled = x.reshape(num_tiles, tb, N, K)

    conv_args = [w1, t1, w2, t2, w3, t3]
    conv_in_specs = [pl.BlockSpec((1, tb, N, K), lambda i: (i, 0, 0, 0))]
    conv_in_specs += [_const_spec(a.shape) for a in conv_args]

    feats = pl.pallas_call(
        _conv_stage_kernel,
        out_shape=jax.ShapeDtypeStruct((num_tiles, tb, 1024), jnp.float32),
        grid=(num_tiles,),
        in_specs=conv_in_specs,
        out_specs=pl.BlockSpec((1, tb, 1024), lambda i: (i, 0, 0)),
        compiler_params=pltpu.CompilerParams(
            dimension_semantics=("parallel",),
            vmem_limit_bytes=32 * 1024 * 1024),
    )(x_tiled, *conv_args)

    feats = feats.reshape(b_pad, 1024)[:B]                        # (B, 1024)

    # ---- stage 2: FC chain once for the whole batch, lane-dense output ----
    eye_flat = jnp.eye(K, dtype=jnp.float32).reshape(1, K * K)
    t6_eff = t6 + eye_flat                  # fc3 bias + flattened identity

    fc_args = [w4, t4, w5, t5, w6, t6_eff]
    fc_in_specs = [pl.BlockSpec((B, 1024), lambda i: (0, 0))]
    fc_in_specs += [_const_spec(a.shape) for a in fc_args]

    out = pl.pallas_call(
        _fc_stage_kernel,
        out_shape=jax.ShapeDtypeStruct((B, K * K), jnp.float32),
        grid=(1,),
        in_specs=fc_in_specs,
        out_specs=pl.BlockSpec((B, K * K), lambda i: (0, 0)),
        compiler_params=pltpu.CompilerParams(
            dimension_semantics=("arbitrary",),
            vmem_limit_bytes=32 * 1024 * 1024),
    )(feats, *fc_args)

    return out.reshape(B, K, K)


def init_params(key, K):
    """Parameters mirroring the PyTorch module, with eval-mode BN folded in.

    Conv1d(k->64), Conv1d(64->128), Conv1d(128->1024) [+BN each],
    Linear(1024->512), Linear(512->256) [+BN each], Linear(256->k*k).
    BN (eval, PyTorch defaults): gamma=1, beta=0, mean=0, var=1, eps=1e-5
      => BN(Wx+b) = s*(Wx+b) with s = 1/sqrt(1+eps), folded as W*=s, b*=s.
    Weights stored in bf16 (MXU input dtype); shifts kept in f32.
    """
    eps = 1e-5
    bn_scale = 1.0 / (1.0 + eps) ** 0.5
    dims = [(K, 64), (64, 128), (128, 1024), (1024, 512), (512, 256), (256, K * K)]
    keys = jax.random.split(key, 2 * len(dims))
    params = []
    for i, (fi, fo) in enumerate(dims):
        bound = 1.0 / float(fi) ** 0.5
        w = jax.random.uniform(keys[2 * i], (fi, fo), jnp.float32, -bound, bound)
        b = jax.random.uniform(keys[2 * i + 1], (1, fo), jnp.float32, -bound, bound)
        if i < 5:  # first 5 layers are followed by BatchNorm
            w = w * bn_scale
            b = b * bn_scale
        params += [w.astype(jnp.bfloat16), b]
    return params


if __name__ == "__main__":
    B, N, K = 2, 32, 64  # batch, num points, k (TNet default k=64)
    key = jax.random.PRNGKey(0)
    kx, kp = jax.random.split(key)
    x = jax.random.normal(kx, (B, N, K), jnp.float32)
    params = init_params(kp, K)

    out = tnet_forward(x, params)
    jax.block_until_ready(out)
    assert out.shape == (B, K, K) and out.dtype == jnp.float32
    print("KERNEL_OK")
</pallas_src>

<mosaic_0001>
module attributes {stable_mosaic.version = 11 : i64} {
  func.func @_conv_stage_kernel(%arg0: i32, %arg1: memref<1x2x32x64xf32, #tpu.memory_space<vmem>>, %arg2: memref<64x64xbf16, #tpu.memory_space<vmem>>, %arg3: memref<1x64xf32, #tpu.memory_space<vmem>>, %arg4: memref<64x128xbf16, #tpu.memory_space<vmem>>, %arg5: memref<1x128xf32, #tpu.memory_space<vmem>>, %arg6: memref<128x1024xbf16, #tpu.memory_space<vmem>>, %arg7: memref<1x1024xf32, #tpu.memory_space<vmem>>, %arg8: memref<1x2x1024xf32, #tpu.memory_space<vmem>>) attributes {dimension_semantics = [#tpu.dimension_semantics<parallel>], iteration_bounds = array<i64: 1>, scalar_prefetch = 0 : i64, scratch_operands = 0 : i64, tpu.core_type = #tpu.core_type<tc>, window_params = [{transform_indices = @transform_0, window_bounds = array<i64: 1, 2, 32, 64>}, {pipeline_mode = #tpu.pipeline_mode<synchronous>, transform_indices = @transform_1, window_bounds = array<i64: 64, 64>}, {pipeline_mode = #tpu.pipeline_mode<synchronous>, transform_indices = @transform_2, window_bounds = array<i64: 1, 64>}, {pipeline_mode = #tpu.pipeline_mode<synchronous>, transform_indices = @transform_3, window_bounds = array<i64: 64, 128>}, {pipeline_mode = #tpu.pipeline_mode<synchronous>, transform_indices = @transform_4, window_bounds = array<i64: 1, 128>}, {pipeline_mode = #tpu.pipeline_mode<synchronous>, transform_indices = @transform_5, window_bounds = array<i64: 128, 1024>}, {pipeline_mode = #tpu.pipeline_mode<synchronous>, transform_indices = @transform_6, window_bounds = array<i64: 1, 1024>}, {transform_indices = @transform_7, window_bounds = array<i64: 1, 2, 1024>}]} {
    %c0 = arith.constant 0 : index
    %c0_0 = arith.constant 0 : index
    %c0_1 = arith.constant 0 : index
    %c0_2 = arith.constant 0 : index
    %0 = vector.load %arg1[%c0, %c0_0, %c0_1, %c0_2] : memref<1x2x32x64xf32, #tpu.memory_space<vmem>>, vector<1x2x32x64xf32>
    %1 = vector.shape_cast %0 : vector<1x2x32x64xf32> to vector<2x32x64xf32>
    %2 = vector.shape_cast %1 : vector<2x32x64xf32> to vector<64x64xf32>
    %3 = arith.truncf %2 : vector<64x64xf32> to vector<64x64xbf16>
    %c0_3 = arith.constant 0 : index
    %c0_4 = arith.constant 0 : index
    %4 = vector.load %arg2[%c0_3, %c0_4] : memref<64x64xbf16, #tpu.memory_space<vmem>>, vector<64x64xbf16>
    %cst = arith.constant dense<0.000000e+00> : vector<64x64xf32>
    %5 = tpu.matmul %3, %4, %cst {dimension_numbers = #tpu.dot_dimension_numbers<[1], [0], [0], [1], [0, 0, 1, 1], [], []>} : vector<64x64xbf16>, vector<64x64xbf16>, vector<64x64xf32> -> vector<64x64xf32>
    %c0_5 = arith.constant 0 : index
    %c0_6 = arith.constant 0 : index
    %6 = vector.load %arg3[%c0_5, %c0_6] : memref<1x64xf32, #tpu.memory_space<vmem>>, vector<1x64xf32>
    %7 = vector.broadcast %6 : vector<1x64xf32> to vector<64x64xf32>
    %8 = arith.addf %5, %7 : vector<64x64xf32>
    %cst_7 = arith.constant 0.000000e+00 : f32
    %9 = vector.broadcast %cst_7 : f32 to vector<64x64xf32>
    %10 = arith.maximumf %8, %9 : vector<64x64xf32>
    %11 = arith.truncf %10 : vector<64x64xf32> to vector<64x64xbf16>
    %c0_8 = arith.constant 0 : index
    %c0_9 = arith.constant 0 : index
    %12 = vector.load %arg4[%c0_8, %c0_9] : memref<64x128xbf16, #tpu.memory_space<vmem>>, vector<64x128xbf16>
    %cst_10 = arith.constant dense<0.000000e+00> : vector<64x128xf32>
    %13 = tpu.matmul %11, %12, %cst_10 {dimension_numbers = #tpu.dot_dimension_numbers<[1], [0], [0], [1], [0, 0, 1, 1], [], []>} : vector<64x64xbf16>, vector<64x128xbf16>, vector<64x128xf32> -> vector<64x128xf32>
    %c0_11 = arith.constant 0 : index
    %c0_12 = arith.constant 0 : index
    %14 = vector.load %arg5[%c0_11, %c0_12] : memref<1x128xf32, #tpu.memory_space<vmem>>, vector<1x128xf32>
    %15 = vector.broadcast %14 : vector<1x128xf32> to vector<64x128xf32>
    %16 = arith.addf %13, %15 : vector<64x128xf32>
    %cst_13 = arith.constant 0.000000e+00 : f32
    %17 = vector.broadcast %cst_13 : f32 to vector<64x128xf32>
    %18 = arith.maximumf %16, %17 : vector<64x128xf32>
    %19 = arith.truncf %18 : vector<64x128xf32> to vector<64x128xbf16>
    %c0_14 = arith.constant 0 : index
    %c0_15 = arith.constant 0 : index
    %20 = vector.load %arg6[%c0_14, %c0_15] : memref<128x1024xbf16, #tpu.memory_space<vmem>>, vector<128x1024xbf16>
    %cst_16 = arith.constant dense<0.000000e+00> : vector<64x1024xf32>
    %21 = tpu.matmul %19, %20, %cst_16 {dimension_numbers = #tpu.dot_dimension_numbers<[1], [0], [0], [1], [0, 0, 1, 1], [], []>} : vector<64x128xbf16>, vector<128x1024xbf16>, vector<64x1024xf32> -> vector<64x1024xf32>
    %c0_17 = arith.constant 0 : index
    %c0_18 = arith.constant 0 : index
    %22 = vector.load %arg7[%c0_17, %c0_18] : memref<1x1024xf32, #tpu.memory_space<vmem>>, vector<1x1024xf32>
    %23 = vector.broadcast %22 : vector<1x1024xf32> to vector<64x1024xf32>
    %24 = arith.addf %21, %23 : vector<64x1024xf32>
    %cst_19 = arith.constant 0.000000e+00 : f32
    %25 = vector.broadcast %cst_19 : f32 to vector<64x1024xf32>
    %26 = arith.maximumf %24, %25 : vector<64x1024xf32>
    %27 = vector.shape_cast %26 : vector<64x1024xf32> to vector<2x32x1024xf32>
    %cst_20 = arith.constant dense<0xFF800000> : vector<2x1024xf32>
    %28 = vector.multi_reduction <maximumf>, %27, %cst_20 [1] : vector<2x32x1024xf32> to vector<2x1024xf32>
    %c0_21 = arith.constant 0 : index
    %c0_22 = arith.constant 0 : index
    %c0_23 = arith.constant 0 : index
    %29 = vector.load %arg8[%c0_21, %c0_22, %c0_23] : memref<1x2x1024xf32, #tpu.memory_space<vmem>>, vector<1x2x1024xf32>
    %30 = vector.shape_cast %29 : vector<1x2x1024xf32> to vector<2x1024xf32>
    %31 = vector.shape_cast %28 : vector<2x1024xf32> to vector<1x2x1024xf32>
    tpu.vector_store %arg8[%c0_21, %c0_22, %c0_23], %31 {strides = array<i32>} : memref<1x2x1024xf32, #tpu.memory_space<vmem>>, vector<1x2x1024xf32>,
    return
  }
  func.func @transform_0(%arg0: i32) -> (i32, i32, i32, i32) {
    %c0_i32 = arith.constant 0 : i32
    %c0_i32_0 = arith.constant 0 : i32
    %c0_i32_1 = arith.constant 0 : i32
    %c0_i32_2 = arith.constant 0 : i32
    return %arg0, %c0_i32, %c0_i32_0, %c0_i32_1 : i32, i32, i32, i32
  }
  func.func @transform_1(%arg0: i32) -> (i32, i32) {
    %c0_i32 = arith.constant 0 : i32
    %c0_i32_0 = arith.constant 0 : i32
    %c0_i32_1 = arith.constant 0 : i32
    return %c0_i32, %c0_i32_0 : i32, i32
  }
  func.func @transform_2(%arg0: i32) -> (i32, i32) {
    %c0_i32 = arith.constant 0 : i32
    %c0_i32_0 = arith.constant 0 : i32
    %c0_i32_1 = arith.constant 0 : i32
    return %c0_i32, %c0_i32_0 : i32, i32
  }
  func.func @transform_3(%arg0: i32) -> (i32, i32) {
    %c0_i32 = arith.constant 0 : i32
    %c0_i32_0 = arith.constant 0 : i32
    %c0_i32_1 = arith.constant 0 : i32
    return %c0_i32, %c0_i32_0 : i32, i32
  }
  func.func @transform_4(%arg0: i32) -> (i32, i32) {
    %c0_i32 = arith.constant 0 : i32
    %c0_i32_0 = arith.constant 0 : i32
    %c0_i32_1 = arith.constant 0 : i32
    return %c0_i32, %c0_i32_0 : i32, i32
  }
  func.func @transform_5(%arg0: i32) -> (i32, i32) {
    %c0_i32 = arith.constant 0 : i32
    %c0_i32_0 = arith.constant 0 : i32
    %c0_i32_1 = arith.constant 0 : i32
    return %c0_i32, %c0_i32_0 : i32, i32
  }
  func.func @transform_6(%arg0: i32) -> (i32, i32) {
    %c0_i32 = arith.constant 0 : i32
    %c0_i32_0 = arith.constant 0 : i32
    %c0_i32_1 = arith.constant 0 : i32
    return %c0_i32, %c0_i32_0 : i32, i32
  }
  func.func @transform_7(%arg0: i32) -> (i32, i32, i32) {
    %c0_i32 = arith.constant 0 : i32
    %c0_i32_0 = arith.constant 0 : i32
    %c0_i32_1 = arith.constant 0 : i32
    return %arg0, %c0_i32, %c0_i32_0 : i32, i32, i32
  }
}

</mosaic_0001>

<llo_original>
// kernel: tpu_custom_call.1
$region0: #{tpu_custom_call.1}
  #allocation0 [shape = 'u32[]', space=smem, size = 0x4, offset = 0x4, fixed_abs, tag = 'smem constant byte address 0x4 - core index']
  #allocation1 [shape = 'u32[144,128]{1,0:T(1,128)}', space=vmem, size = 0x12000, scoped, tag = 'internal scratch']
  %s0 = inlined_call_operand.hbm [shape: f32[1,2,32,64], index: 0, kind: input, shape index: {}]
  %s1 = inlined_call_operand.hbm [shape: bf16[64,64], index: 1, kind: input, shape index: {}]
  %s2 = inlined_call_operand.vmem [shape: f32[1,64], index: 2, kind: input, shape index: {}]
  %s3 = inlined_call_operand.hbm [shape: bf16[64,128], index: 3, kind: input, shape index: {}]
  %s4 = inlined_call_operand.vmem [shape: f32[1,128], index: 4, kind: input, shape index: {}]
  %s5 = inlined_call_operand.hbm [shape: bf16[128,1024], index: 5, kind: input, shape index: {}]
  %s6 = inlined_call_operand.vmem [shape: f32[1,1024], index: 6, kind: input, shape index: {}]
  %s7 = inlined_call_operand.hbm [shape: f32[1,2,1024], index: 7, kind: output, shape index: {}]
  %s8 = sld [smem:[#allocation0]]
  $region54: #{tpu_custom_call.1} parent=0
    _
  %s10 = ssub.s32 1, %s8
  %s11 = scalar_select 0, %s10, %s8
  $region1: #{tpu_custom_call.1} parent=0
    #allocation2 [shape = 'u8[32768]{0}', space=vmem, size = 0x8000, scoped, tag = 'input window, operand 0, single buffered']
    #allocation3 [shape = 's32[1]{0}', space=sflag, size = 0x4, scoped, tag = 'scoped memory for tpu_custom_call.1']
    #allocation4 [shape = 's32[1]{0}', space=sflag, size = 0x4, scoped, tag = 'scoped memory for tpu_custom_call.1']
    #allocation5 [shape = 'u8[16384]{0}', space=vmem, size = 0x4000, scoped, tag = 'input window, operand 1, single buffered']
    #allocation6 [shape = 's32[1]{0}', space=sflag, size = 0x4, scoped, tag = 'scoped memory for tpu_custom_call.1']
    #allocation7 [shape = 'u8[16384]{0}', space=vmem, size = 0x4000, scoped, tag = 'input window, operand 3, single buffered']
    #allocation8 [shape = 'u8[262144]{0}', space=vmem, size = 0x40000, scoped, tag = 'input window, operand 5, single buffered']
    #allocation9 [shape = 's32[1]{0}', space=sflag, size = 0x4, scoped, tag = 'scoped memory for tpu_custom_call.1']
    #allocation10 [shape = 'u8[8192]{0}', space=vmem, size = 0x2000, scoped, tag = 'output window, operand 0, single buffered']
    %12 = vsyncpa [#allocation3], 0
    %13 = vsyncpa [#allocation6], 0
    %14 = vsyncpa [#allocation9], 0
    %15 = vsyncpa [#allocation4], 0
    // Predicated region
    $region2: #{tpu_custom_call.1} parent=1 // pred_check
      _
    $region3: #{tpu_custom_call.1} parent=1 // pred_check_branch
      %17 = sbr.rel (0) target = $region5
    $region4: #{tpu_custom_call.1} parent=1 // pred_region
      %s19 = ssub.s32 1024, 1024
      %20 = vsyncadd [#allocation3], %s19
      %s21 = sshll.u32 [#allocation2], 4
      %s22 = int_to_ptr.vmem [resolvable:$true] %s21
      %27 = dma.hbm_to_vmem [thread:$0]  %s0, 1024, %s22, [#allocation3], 128, 128, 8
    $region5: #{tpu_custom_call.1} parent=1 // pred_fallthru
      _
    // Predicated region
    $region6: #{tpu_custom_call.1} parent=1 // pred_check
      _
    $region7: #{tpu_custom_call.1} parent=1 // pred_check_branch
      %29 = sbr.rel (0) target = $region9
    $region8: #{tpu_custom_call.1} parent=1 // pred_region
      %s31 = ssub.s32 512, 512
      %32 = vsyncadd [#allocation6], %s31
      %s33 = sshll.u32 [#allocation5], 4
      %s34 = int_to_ptr.vmem [resolvable:$true] %s33
      %39 = dma.hbm_to_vmem [thread:$0]  %s1, 512, %s34, [#allocation6], 64, 64, 4
    $region9: #{tpu_custom_call.1} parent=1 // pred_fallthru
      _
    // Predicated region
    $region10: #{tpu_custom_call.1} parent=1 // pred_check
      _
    $region11: #{tpu_custom_call.1} parent=1 // pred_check_branch
      %41 = sbr.rel (0) target = $region13
    $region12: #{tpu_custom_call.1} parent=1 // pred_region
      _
    $region13: #{tpu_custom_call.1} parent=1 // pred_fallthru
      _
    // Predicated region
    $region14: #{tpu_custom_call.1} parent=1 // pred_check
      _
    $region15: #{tpu_custom_call.1} parent=1 // pred_check_branch
      %43 = sbr.rel (0) target = $region17
    $region16: #{tpu_custom_call.1} parent=1 // pred_region
      %s45 = ssub.s32 512, 512
      %46 = vsyncadd [#allocation6], %s45
      %s47 = sshll.u32 [#allocation7], 4
      %s48 = int_to_ptr.vmem [resolvable:$true] %s47
      %53 = dma.hbm_to_vmem [thread:$0]  %s3, 512, %s48, [#allocation6], 64, 64, 4
    $region17: #{tpu_custom_call.1} parent=1 // pred_fallthru
      _
    // Predicated region
    $region18: #{tpu_custom_call.1} parent=1 // pred_check
      _
    $region19: #{tpu_custom_call.1} parent=1 // pred_check_branch
      %55 = sbr.rel (0) target = $region21
    $region20: #{tpu_custom_call.1} parent=1 // pred_region
      _
    $region21: #{tpu_custom_call.1} parent=1 // pred_fallthru
      _
    // Predicated region
    $region22: #{tpu_custom_call.1} parent=1 // pred_check
      _
    $region23: #{tpu_custom_call.1} parent=1 // pred_check_branch
      %57 = sbr.rel (0) target = $region25
    $region24: #{tpu_custom_call.1} parent=1 // pred_region
      %s59 = ssub.s32 8192, 8192
      %60 = vsyncadd [#allocation9], %s59
      %s61 = sshll.u32 [#allocation8], 4
      %s62 = int_to_ptr.vmem [resolvable:$true] %s61
      %67 = dma.hbm_to_vmem [thread:$0]  %s5, 8192, %s62, [#allocation9], 512, 512, 32
    $region25: #{tpu_custom_call.1} parent=1 // pred_fallthru
      _
    // Predicated region
    $region26: #{tpu_custom_call.1} parent=1 // pred_check
      _
    $region27: #{tpu_custom_call.1} parent=1 // pred_check_branch
      %69 = sbr.rel (0) target = $region29
    $region28: #{tpu_custom_call.1} parent=1 // pred_region
      _
    $region29: #{tpu_custom_call.1} parent=1 // pred_fallthru
      _
    // Predicated region
    $region30: #{tpu_custom_call.1} parent=1 // pred_check
      _
    $region31: #{tpu_custom_call.1} parent=1 // pred_check_branch
      %71 = sbr.rel (0) target = $region33
    $region32: #{tpu_custom_call.1} parent=1 // pred_region
      %72 = dma.done [#allocation3], 1024
    $region33: #{tpu_custom_call.1} parent=1 // pred_fallthru
      _
    // Predicated region
    $region34: #{tpu_custom_call.1} parent=1 // pred_check
      _
    $region35: #{tpu_custom_call.1} parent=1 // pred_check_branch
      %74 = sbr.rel (0) target = $region37
    $region36: #{tpu_custom_call.1} parent=1 // pred_region
      %75 = dma.done [#allocation6], 512
    $region37: #{tpu_custom_call.1} parent=1 // pred_fallthru
      _
    // Predicated region
    $region38: #{tpu_custom_call.1} parent=1 // pred_check
      _
    $region39: #{tpu_custom_call.1} parent=1 // pred_check_branch
      %77 = sbr.rel (0) target = $region41
    $region40: #{tpu_custom_call.1} parent=1 // pred_region
      %78 = dma.done [#allocation6], 512
    $region41: #{tpu_custom_call.1} parent=1 // pred_fallthru
      _
    // Predicated region
    $region42: #{tpu_custom_call.1} parent=1 // pred_check
      _
    $region43: #{tpu_custom_call.1} parent=1 // pred_check_branch
      %80 = sbr.rel (0) target = $region45
    $region44: #{tpu_custom_call.1} parent=1 // pred_region
      %81 = dma.done [#allocation9], 8192
    $region45: #{tpu_custom_call.1} parent=1 // pred_fallthru
      _
    %v83 = vld [vmem:[#allocation2] sm:$0xff]
    %v84 = vld [vmem:[#allocation2 + $0x8] sm:$0xff]
    %v85 = vld [vmem:[#allocation2 + $0x10] sm:$0xff]
    %v86 = vld [vmem:[#allocation2 + $0x18] sm:$0xff]
    %v87 = vld [vmem:[#allocation2 + $0x20] sm:$0xff]
    %v88 = vld [vmem:[#allocation2 + $0x28] sm:$0xff]
    %v89 = vld [vmem:[#allocation2 + $0x30] sm:$0xff]
    %v90 = vld [vmem:[#allocation2 + $0x38] sm:$0xff]
    %v91 = vpack.c.bf16 %v84, %v83
    %v92 = vpack.c.bf16 %v86, %v85
    %v93 = vpack.c.bf16 %v88, %v87
    %v94 = vpack.c.bf16 %v90, %v89
    %v95 = vld [vmem:[#allocation5] sm:$0xf]
    %v96 = vld [vmem:[#allocation5 + $0x4] sm:$0xf]
    %v97 = vld [vmem:[#allocation5 + $0x8] sm:$0xf]
    %v98 = vld [vmem:[#allocation5 + $0xc] sm:$0xf]
    %v99 = vld [vmem:[#allocation5 + $0x10] sm:$0xf]
    %v100 = vld [vmem:[#allocation5 + $0x14] sm:$0xf]
    %v101 = vld [vmem:[#allocation5 + $0x18] sm:$0xf]
    %v102 = vld [vmem:[#allocation5 + $0x1c] sm:$0xf]
    %v103 = vld [vmem:[%s2] sm:$0x1]
    %v105 = vlaneseq
    %v106 = vshrl.u32 %v105, 7
    %v107 = vsub.s32 0, %v106
    %v108 = vrot.slane %v103, %v107
    %v118 = vunpack.c.l.b16 %v95
    %v119 = vunpack.c.l.b16 %v96
    %v120 = vunpack.c.l.b16 %v97
    %v121 = vunpack.c.l.b16 %v98
    %v122 = vunpack.c.l.b16 %v99
    %v123 = vunpack.c.l.b16 %v100
    %v124 = vunpack.c.l.b16 %v101
    %v125 = vunpack.c.l.b16 %v102
    %v126 = vpack.c.b16 %v119, %v118
    %v127 = vpack.c.b16 %v121, %v120
    %v128 = vpack.c.b16 %v123, %v122
    %v129 = vpack.c.b16 %v125, %v124
    %vm134 = vcmask 523264
    %v136 = vsel %vm134, %v91, 0
    %v139 = vsel %vm134, %v92, 0
    %v142 = vsel %vm134, %v93, 0
    %v145 = vsel %vm134, %v94, 0
    %147 = vmatprep.subr.bf16.mxu0 0
    %148 = vmatpush1.bf16.msra.mxu0 0
    %149 = vmatprep.subr.bf16.mxu0 0
    %150 = vmatpush1.bf16.msra.mxu0 0
    %151 = vmatprep.subr.bf16.mxu0 0
    %152 = vmatpush1.bf16.msra.mxu0 0
    %153 = vmatprep.subr.bf16.mxu0 0
    %154 = vmatpush1.bf16.msra.mxu0 0
    %155 = vmatprep.subr.bf16.mxu0 0
    %156 = vmatpush1.bf16.msra.mxu0 %v129
    %157 = vmatprep.subr.bf16.mxu0 0
    %158 = vmatpush1.bf16.msra.mxu0 %v128
    %159 = vmatprep.subr.bf16.mxu0 0
    %160 = vmatpush1.bf16.msra.mxu0 %v127
    %161 = vmatprep.subr.bf16.mxu0 0
    %162 = vmatpush1.bf16.msra.mxu0 %v126
    %163 = vmatprep.subr.bf16.mxu0 0
    %164 = vmatpush2.bf16.msra.mxu0 0
    %165 = vmatprep.subr.bf16.mxu0 0
    %166 = vmatpush2.bf16.msra.mxu0 0
    %167 = vmatprep.subr.bf16.mxu0 0
    %168 = vmatpush2.bf16.msra.mxu0 0
    %169 = vmatprep.subr.bf16.mxu0 0
    %170 = vmatpush2.bf16.msra.mxu0 0
    %171 = vmatprep.subr.bf16.mxu0 0
    %172 = vmatpush2.bf16.msra.mxu0 0
    %173 = vmatprep.subr.bf16.mxu0 0
    %174 = vmatpush2.bf16.msra.mxu0 0
    %175 = vmatprep.subr.bf16.mxu0 0
    %176 = vmatpush2.bf16.msra.mxu0 0
    %177 = vmatprep.subr.bf16.mxu0 0
    %178 = vmatpush2.bf16.msra.mxu0 0
    %179 = vmatprep.mubr.bf16.mxu0 0
    %180 = vmatmul.mubr.bf16.gmra.mxu0 %v136
    %v181 = vpop.f32.mrf.mxu0
    %v182 = vadd.f32 %v108, %v181
    %v183 = vpop.f32.mrf.mxu0
    %v184 = vpop.f32.mrf.mxu0
    %v185 = vadd.f32 %v108, %v184
    %v186 = vpop.f32.mrf.mxu0
    %187 = vmatprep.mubr.bf16.mxu0 0
    %188 = vmatmul.mubr.bf16.gmra.mxu0 %v139
    %v189 = vpop.f32.mrf.mxu0
    %v190 = vadd.f32 %v108, %v189
    %v191 = vpop.f32.mrf.mxu0
    %v192 = vpop.f32.mrf.mxu0
    %v193 = vadd.f32 %v108, %v192
    %v194 = vpop.f32.mrf.mxu0
    %195 = vmatprep.mubr.bf16.mxu0 0
    %196 = vmatmul.mubr.bf16.gmra.mxu0 %v142
    %v197 = vpop.f32.mrf.mxu0
    %v198 = vadd.f32 %v108, %v197
    %v199 = vpop.f32.mrf.mxu0
    %v200 = vpop.f32.mrf.mxu0
    %v201 = vadd.f32 %v108, %v200
    %v202 = vpop.f32.mrf.mxu0
    %203 = vmatprep.mubr.bf16.mxu0 0
    %204 = vmatmul.mubr.bf16.gmra.mxu0 %v145
    %v205 = vpop.f32.mrf.mxu0
    %v206 = vadd.f32 %v108, %v205
    %v207 = vpop.f32.mrf.mxu0
    %v208 = vpop.f32.mrf.mxu0
    %v209 = vadd.f32 %v108, %v208
    %v210 = vpop.f32.mrf.mxu0
    %211 = vdwg.mxu0
    %v212 = vmax.f32 %v182, 0.0
    %v213 = vmax.f32 %v185, 0.0
    %v214 = vmax.f32 %v190, 0.0
    %v215 = vmax.f32 %v193, 0.0
    %v216 = vmax.f32 %v198, 0.0
    %v217 = vmax.f32 %v201, 0.0
    %v218 = vmax.f32 %v206, 0.0
    %v219 = vmax.f32 %v209, 0.0
    %v220 = vpack.c.bf16 %v213, %v212
    %v221 = vpack.c.bf16 %v215, %v214
    %v222 = vpack.c.bf16 %v217, %v216
    %v223 = vpack.c.bf16 %v219, %v218
    %v224 = vld [vmem:[#allocation7] sm:$0xf]
    %v225 = vld [vmem:[#allocation7 + $0x4] sm:$0xf]
    %v226 = vld [vmem:[#allocation7 + $0x8] sm:$0xf]
    %v227 = vld [vmem:[#allocation7 + $0xc] sm:$0xf]
    %v228 = vld [vmem:[#allocation7 + $0x10] sm:$0xf]
    %v229 = vld [vmem:[#allocation7 + $0x14] sm:$0xf]
    %v230 = vld [vmem:[#allocation7 + $0x18] sm:$0xf]
    %v231 = vld [vmem:[#allocation7 + $0x1c] sm:$0xf]
    %v232 = vld [vmem:[%s4] sm:$0x1]
    %v234 = vlaneseq
    %v235 = vshrl.u32 %v234, 7
    %v236 = vsub.s32 0, %v235
    %v237 = vrot.slane %v232, %v236
    %v247 = vunpack.c.l.b16 %v224
    %v248 = vunpack.c.l.b16 %v225
    %v249 = vunpack.c.l.b16 %v226
    %v250 = vunpack.c.l.b16 %v227
    %v251 = vunpack.c.l.b16 %v228
    %v252 = vunpack.c.l.b16 %v229
    %v253 = vunpack.c.l.b16 %v230
    %v254 = vunpack.c.l.b16 %v231
    %v255 = vpack.c.b16 %v248, %v247
    %v256 = vpack.c.b16 %v250, %v249
    %v257 = vpack.c.b16 %v252, %v251
    %v258 = vpack.c.b16 %v254, %v253
    %v264 = vsel %vm134, %v220, 0
    %v267 = vsel %vm134, %v221, 0
    %v270 = vsel %vm134, %v222, 0
    %v273 = vsel %vm134, %v223, 0
    %275 = vmatprep.subr.bf16.mxu0 0
    %276 = vmatpush1.bf16.msra.mxu0 0
    %277 = vmatprep.subr.bf16.mxu0 0
    %278 = vmatpush1.bf16.msra.mxu0 0
    %279 = vmatprep.subr.bf16.mxu0 0
    %280 = vmatpush1.bf16.msra.mxu0 0
    %281 = vmatprep.subr.bf16.mxu0 0
    %282 = vmatpush1.bf16.msra.mxu0 0
    %283 = vmatprep.subr.bf16.mxu0 0
    %284 = vmatpush1.bf16.msra.mxu0 %v258
    %285 = vmatprep.subr.bf16.mxu0 0
    %286 = vmatpush1.bf16.msra.mxu0 %v257
    %287 = vmatprep.subr.bf16.mxu0 0
    %288 = vmatpush1.bf16.msra.mxu0 %v256
    %289 = vmatprep.subr.bf16.mxu0 0
    %290 = vmatpush1.bf16.msra.mxu0 %v255
    %291 = vmatprep.subr.bf16.mxu0 0
    %292 = vmatpush2.bf16.msra.mxu0 0
    %293 = vmatprep.subr.bf16.mxu0 0
    %294 = vmatpush2.bf16.msra.mxu0 0
    %295 = vmatprep.subr.bf16.mxu0 0
    %296 = vmatpush2.bf16.msra.mxu0 0
    %297 = vmatprep.subr.bf16.mxu0 0
    %298 = vmatpush2.bf16.msra.mxu0 0
    %299 = vmatprep.subr.bf16.mxu0 0
    %300 = vmatpush2.bf16.msra.mxu0 0
    %301 = vmatprep.subr.bf16.mxu0 0
    %302 = vmatpush2.bf16.msra.mxu0 0
    %303 = vmatprep.subr.bf16.mxu0 0
    %304 = vmatpush2.bf16.msra.mxu0 0
    %305 = vmatprep.subr.bf16.mxu0 0
    %306 = vmatpush2.bf16.msra.mxu0 0
    %307 = vmatprep.mubr.bf16.mxu0 0
    %308 = vmatmul.mubr.bf16.gmra.mxu0 %v264
    %v309 = vpop.f32.mrf.mxu0
    %v310 = vadd.f32 %v237, %v309
    %v311 = vpop.f32.mrf.mxu0
    %v312 = vpop.f32.mrf.mxu0
    %v313 = vadd.f32 %v237, %v312
    %v314 = vpop.f32.mrf.mxu0
    %315 = vmatprep.mubr.bf16.mxu0 0
    %316 = vmatmul.mubr.bf16.gmra.mxu0 %v267
    %v317 = vpop.f32.mrf.mxu0
    %v318 = vadd.f32 %v237, %v317
    %v319 = vpop.f32.mrf.mxu0
    %v320 = vpop.f32.mrf.mxu0
    %v321 = vadd.f32 %v237, %v320
    %v322 = vpop.f32.mrf.mxu0
    %323 = vmatprep.mubr.bf16.mxu0 0
    %324 = vmatmul.mubr.bf16.gmra.mxu0 %v270
    %v325 = vpop.f32.mrf.mxu0
    %v326 = vadd.f32 %v237, %v325
    %v327 = vpop.f32.mrf.mxu0
    %v328 = vpop.f32.mrf.mxu0
    %v329 = vadd.f32 %v237, %v328
    %v330 = vpop.f32.mrf.mxu0
    %331 = vmatprep.mubr.bf16.mxu0 0
    %332 = vmatmul.mubr.bf16.gmra.mxu0 %v273
    %v333 = vpop.f32.mrf.mxu0
    %v334 = vadd.f32 %v237, %v333
    %v335 = vpop.f32.mrf.mxu0
    %v336 = vpop.f32.mrf.mxu0
    %v337 = vadd.f32 %v237, %v336
    %v338 = vpop.f32.mrf.mxu0
    %339 = vdwg.mxu0
    %v340 = vmax.f32 %v310, 0.0
    %v341 = vmax.f32 %v313, 0.0
    %v342 = vmax.f32 %v318, 0.0
    %v343 = vmax.f32 %v321, 0.0
    %v344 = vmax.f32 %v326, 0.0
    %v345 = vmax.f32 %v329, 0.0
    %v346 = vmax.f32 %v334, 0.0
    %v347 = vmax.f32 %v337, 0.0
    %v348 = vpack.c.bf16 %v341, %v340
    %v349 = vpack.c.bf16 %v343, %v342
    %v350 = vpack.c.bf16 %v345, %v344
    %v351 = vpack.c.bf16 %v347, %v346
    %v352 = vld [vmem:[#allocation8] sm:$0xff]
    %v353 = vld [vmem:[#allocation8 + $0x8] sm:$0xff]
    %v354 = vld [vmem:[#allocation8 + $0x10] sm:$0xff]
    %v355 = vld [vmem:[#allocation8 + $0x18] sm:$0xff]
    %v356 = vld [vmem:[#allocation8 + $0x20] sm:$0xff]
    %v357 = vld [vmem:[#allocation8 + $0x28] sm:$0xff]
    %v358 = vld [vmem:[#allocation8 + $0x30] sm:$0xff]
    %v359 = vld [vmem:[#allocation8 + $0x38] sm:$0xff]
    %v360 = vld [vmem:[#allocation8 + $0x40] sm:$0xff]
    %v361 = vld [vmem:[#allocation8 + $0x48] sm:$0xff]
    %v362 = vld [vmem:[#allocation8 + $0x50] sm:$0xff]
    %v363 = vld [vmem:[#allocation8 + $0x58] sm:$0xff]
    %v364 = vld [vmem:[#allocation8 + $0x60] sm:$0xff]
    %v365 = vld [vmem:[#allocation8 + $0x68] sm:$0xff]
    %v366 = vld [vmem:[#allocation8 + $0x70] sm:$0xff]
    %v367 = vld [vmem:[#allocation8 + $0x78] sm:$0xff]
    %v368 = vld [vmem:[#allocation8 + $0x80] sm:$0xff]
    %v369 = vld [vmem:[#allocation8 + $0x88] sm:$0xff]
    %v370 = vld [vmem:[#allocation8 + $0x90] sm:$0xff]
    %v371 = vld [vmem:[#allocation8 + $0x98] sm:$0xff]
    %v372 = vld [vmem:[#allocation8 + $0xa0] sm:$0xff]
    %v373 = vld [vmem:[#allocation8 + $0xa8] sm:$0xff]
    %v374 = vld [vmem:[#allocation8 + $0xb0] sm:$0xff]
    %v375 = vld [vmem:[#allocation8 + $0xb8] sm:$0xff]
    %v376 = vld [vmem:[#allocation8 + $0xc0] sm:$0xff]
    %v377 = vld [vmem:[#allocation8 + $0xc8] sm:$0xff]
    %v378 = vld [vmem:[#allocation8 + $0xd0] sm:$0xff]
    %v379 = vld [vmem:[#allocation8 + $0xd8] sm:$0xff]
    %v380 = vld [vmem:[#allocation8 + $0xe0] sm:$0xff]
    %v381 = vld [vmem:[#allocation8 + $0xe8] sm:$0xff]
    %v382 = vld [vmem:[#allocation8 + $0xf0] sm:$0xff]
    %v383 = vld [vmem:[#allocation8 + $0xf8] sm:$0xff]
    %v384 = vld [vmem:[#allocation8 + $0x100] sm:$0xff]
    %v385 = vld [vmem:[#allocation8 + $0x108] sm:$0xff]
    %v386 = vld [vmem:[#allocation8 + $0x110] sm:$0xff]
    %v387 = vld [vmem:[#allocation8 + $0x118] sm:$0xff]
    %v388 = vld [vmem:[#allocation8 + $0x120] sm:$0xff]
    %v389 = vld [vmem:[#allocation8 + $0x128] sm:$0xff]
    %v390 = vld [vmem:[#allocation8 + $0x130] sm:$0xff]
    %v391 = vld [vmem:[#allocation8 + $0x138] sm:$0xff]
    %v392 = vld [vmem:[#allocation8 + $0x140] sm:$0xff]
    %v393 = vld [vmem:[#allocation8 + $0x148] sm:$0xff]
    %v394 = vld [vmem:[#allocation8 + $0x150] sm:$0xff]
    %v395 = vld [vmem:[#allocation8 + $0x158] sm:$0xff]
    %v396 = vld [vmem:[#allocation8 + $0x160] sm:$0xff]
    %v397 = vld [vmem:[#allocation8 + $0x168] sm:$0xff]
    %v398 = vld [vmem:[#allocation8 + $0x170] sm:$0xff]
    %v399 = vld [vmem:[#allocation8 + $0x178] sm:$0xff]
    %v400 = vld [vmem:[#allocation8 + $0x180] sm:$0xff]
    %v401 = vld [vmem:[#allocation8 + $0x188] sm:$0xff]
    %v402 = vld [vmem:[#allocation8 + $0x190] sm:$0xff]
    %v403 = vld [vmem:[#allocation8 + $0x198] sm:$0xff]
    %v404 = vld [vmem:[#allocation8 + $0x1a0] sm:$0xff]
    %v405 = vld [vmem:[#allocation8 + $0x1a8] sm:$0xff]
    %v406 = vld [vmem:[#allocation8 + $0x1b0] sm:$0xff]
    %v407 = vld [vmem:[#allocation8 + $0x1b8] sm:$0xff]
    %v408 = vld [vmem:[#allocation8 + $0x1c0] sm:$0xff]
    %v409 = vld [vmem:[#allocation8 + $0x1c8] sm:$0xff]
    %v410 = vld [vmem:[#allocation8 + $0x1d0] sm:$0xff]
    %v411 = vld [vmem:[#allocation8 + $0x1d8] sm:$0xff]
    %v412 = vld [vmem:[#allocation8 + $0x1e0] sm:$0xff]
    %v413 = vld [vmem:[#allocation8 + $0x1e8] sm:$0xff]
    %v414 = vld [vmem:[#allocation8 + $0x1f0] sm:$0xff]
    %v415 = vld [vmem:[#allocation8 + $0x1f8] sm:$0xff]
    %v416 = vld [vmem:[%s6] sm:$0xff]
    %v418 = vlaneseq
    %v419 = vshrl.u32 %v418, 7
    %v420 = vsub.s32 0, %v419
    %v421 = vrot.slane %v416, %v420
    %v422 = vlaneseq
    %v423 = vshrl.u32 %v422, 7
    %v424 = vsub.s32 1, %v423
    %v425 = vrot.slane %v416, %v424
    %v426 = vlaneseq
    %v427 = vshrl.u32 %v426, 7
    %v428 = vsub.s32 2, %v427
    %v429 = vrot.slane %v416, %v428
    %v430 = vlaneseq
    %v431 = vshrl.u32 %v430, 7
    %v432 = vsub.s32 3, %v431
    %v433 = vrot.slane %v416, %v432
    %v434 = vlaneseq
    %v435 = vshrl.u32 %v434, 7
    %v436 = vsub.s32 4, %v435
    %v437 = vrot.slane %v416, %v436
    %v438 = vlaneseq
    %v439 = vshrl.u32 %v438, 7
    %v440 = vsub.s32 5, %v439
    %v441 = vrot.slane %v416, %v440
    %v442 = vlaneseq
    %v443 = vshrl.u32 %v442, 7
    %v444 = vsub.s32 6, %v443
    %v445 = vrot.slane %v416, %v444
    %v446 = vlaneseq
    %v447 = vshrl.u32 %v446, 7
    %v448 = vsub.s32 7, %v447
    %v449 = vrot.slane %v416, %v448
    %v522 = vunpack.c.l.b16 %v352
    %v523 = vunpack.c.h.b16 %v352
    %v524 = vunpack.c.l.b16 %v353
    %v525 = vunpack.c.h.b16 %v353
    %v526 = vunpack.c.l.b16 %v354
    %v527 = vunpack.c.h.b16 %v354
    %v528 = vunpack.c.l.b16 %v355
    %v529 = vunpack.c.h.b16 %v355
    %v530 = vunpack.c.l.b16 %v356
    %v531 = vunpack.c.h.b16 %v356
    %v532 = vunpack.c.l.b16 %v357
    %v533 = vunpack.c.h.b16 %v357
    %v534 = vunpack.c.l.b16 %v358
    %v535 = vunpack.c.h.b16 %v358
    %v536 = vunpack.c.l.b16 %v359
    %v537 = vunpack.c.h.b16 %v359
    %v538 = vunpack.c.l.b16 %v360
    %v539 = vunpack.c.h.b16 %v360
    %v540 = vunpack.c.l.b16 %v361
    %v541 = vunpack.c.h.b16 %v361
    %v542 = vunpack.c.l.b16 %v362
    %v543 = vunpack.c.h.b16 %v362
    %v544 = vunpack.c.l.b16 %v363
    %v545 = vunpack.c.h.b16 %v363
    %v546 = vunpack.c.l.b16 %v364
    %v547 = vunpack.c.h.b16 %v364
    %v548 = vunpack.c.l.b16 %v365
    %v549 = vunpack.c.h.b16 %v365
    %v550 = vunpack.c.l.b16 %v366
    %v551 = vunpack.c.h.b16 %v366
    %v552 = vunpack.c.l.b16 %v367
    %v553 = vunpack.c.h.b16 %v367
    %v554 = vunpack.c.l.b16 %v368
    %v555 = vunpack.c.h.b16 %v368
    %v556 = vunpack.c.l.b16 %v369
    %v557 = vunpack.c.h.b16 %v369
    %v558 = vunpack.c.l.b16 %v370
    %v559 = vunpack.c.h.b16 %v370
    %v560 = vunpack.c.l.b16 %v371
    %v561 = vunpack.c.h.b16 %v371
    %v562 = vunpack.c.l.b16 %v372
    %v563 = vunpack.c.h.b16 %v372
    %v564 = vunpack.c.l.b16 %v373
    %v565 = vunpack.c.h.b16 %v373
    %v566 = vunpack.c.l.b16 %v374
    %v567 = vunpack.c.h.b16 %v374
    %v568 = vunpack.c.l.b16 %v375
    %v569 = vunpack.c.h.b16 %v375
    %v570 = vunpack.c.l.b16 %v376
    %v571 = vunpack.c.h.b16 %v376
    %v572 = vunpack.c.l.b16 %v377
    %v573 = vunpack.c.h.b16 %v377
    %v574 = vunpack.c.l.b16 %v378
    %v575 = vunpack.c.h.b16 %v378
    %v576 = vunpack.c.l.b16 %v379
    %v577 = vunpack.c.h.b16 %v379
    %v578 = vunpack.c.l.b16 %v380
    %v579 = vunpack.c.h.b16 %v380
    %v580 = vunpack.c.l.b16 %v381
    %v581 = vunpack.c.h.b16 %v381
    %v582 = vunpack.c.l.b16 %v382
    %v583 = vunpack.c.h.b16 %v382
    %v584 = vunpack.c.l.b16 %v383
    %v585 = vunpack.c.h.b16 %v383
    %v586 = vunpack.c.l.b16 %v384
    %v587 = vunpack.c.h.b16 %v384
    %v588 = vunpack.c.l.b16 %v385
    %v589 = vunpack.c.h.b16 %v385
    %v590 = vunpack.c.l.b16 %v386
    %v591 = vunpack.c.h.b16 %v386
    %v592 = vunpack.c.l.b16 %v387
    %v593 = vunpack.c.h.b16 %v387
    %v594 = vunpack.c.l.b16 %v388
    %v595 = vunpack.c.h.b16 %v388
    %v596 = vunpack.c.l.b16 %v389
    %v597 = vunpack.c.h.b16 %v389
    %v598 = vunpack.c.l.b16 %v390
    %v599 = vunpack.c.h.b16 %v390
    %v600 = vunpack.c.l.b16 %v391
    %v601 = vunpack.c.h.b16 %v391
    %v602 = vunpack.c.l.b16 %v392
    %v603 = vunpack.c.h.b16 %v392
    %v604 = vunpack.c.l.b16 %v393
    %v605 = vunpack.c.h.b16 %v393
    %v606 = vunpack.c.l.b16 %v394
    %v607 = vunpack.c.h.b16 %v394
    %v608 = vunpack.c.l.b16 %v395
    %v609 = vunpack.c.h.b16 %v395
    %v610 = vunpack.c.l.b16 %v396
    %v611 = vunpack.c.h.b16 %v396
    %v612 = vunpack.c.l.b16 %v397
    %v613 = vunpack.c.h.b16 %v397
    %v614 = vunpack.c.l.b16 %v398
    %v615 = vunpack.c.h.b16 %v398
    %v616 = vunpack.c.l.b16 %v399
    %v617 = vunpack.c.h.b16 %v399
    %v618 = vunpack.c.l.b16 %v400
    %v619 = vunpack.c.h.b16 %v400
    %v620 = vunpack.c.l.b16 %v401
    %v621 = vunpack.c.h.b16 %v401
    %v622 = vunpack.c.l.b16 %v402
    %v623 = vunpack.c.h.b16 %v402
    %v624 = vunpack.c.l.b16 %v403
    %v625 = vunpack.c.h.b16 %v403
    %v626 = vunpack.c.l.b16 %v404
    %v627 = vunpack.c.h.b16 %v404
    %v628 = vunpack.c.l.b16 %v405
    %v629 = vunpack.c.h.b16 %v405
    %v630 = vunpack.c.l.b16 %v406
    %v631 = vunpack.c.h.b16 %v406
    %v632 = vunpack.c.l.b16 %v407
    %v633 = vunpack.c.h.b16 %v407
    %v634 = vunpack.c.l.b16 %v408
    %v635 = vunpack.c.h.b16 %v408
    %v636 = vunpack.c.l.b16 %v409
    %v637 = vunpack.c.h.b16 %v409
    %v638 = vunpack.c.l.b16 %v410
    %v639 = vunpack.c.h.b16 %v410
    %v640 = vunpack.c.l.b16 %v411
    %v641 = vunpack.c.h.b16 %v411
    %v642 = vunpack.c.l.b16 %v412
    %v643 = vunpack.c.h.b16 %v412
    %v644 = vunpack.c.l.b16 %v413
    %v645 = vunpack.c.h.b16 %v413
    %v646 = vunpack.c.l.b16 %v414
    %v647 = vunpack.c.h.b16 %v414
    %v648 = vunpack.c.l.b16 %v415
    %v649 = vunpack.c.h.b16 %v415
    %v650 = vpack.c.b16 %v530, %v522
    %v651 = vpack.c.b16 %v531, %v523
    %v652 = vpack.c.b16 %v532, %v524
    %v653 = vpack.c.b16 %v533, %v525
    %v654 = vpack.c.b16 %v534, %v526
    %v655 = vpack.c.b16 %v535, %v527
    %v656 = vpack.c.b16 %v536, %v528
    %v657 = vpack.c.b16 %v537, %v529
    %v658 = vpack.c.b16 %v546, %v538
    %v659 = vpack.c.b16 %v547, %v539
    %v660 = vpack.c.b16 %v548, %v540
    %v661 = vpack.c.b16 %v549, %v541
    %v662 = vpack.c.b16 %v550, %v542
    %v663 = vpack.c.b16 %v551, %v543
    %v664 = vpack.c.b16 %v552, %v544
    %v665 = vpack.c.b16 %v553, %v545
    %v666 = vpack.c.b16 %v562, %v554
    %v667 = vpack.c.b16 %v563, %v555
    %v668 = vpack.c.b16 %v564, %v556
    %v669 = vpack.c.b16 %v565, %v557
    %v670 = vpack.c.b16 %v566, %v558
    %v671 = vpack.c.b16 %v567, %v559
    %v672 = vpack.c.b16 %v568, %v560
    %v673 = vpack.c.b16 %v569, %v561
    %v674 = vpack.c.b16 %v578, %v570
    %v675 = vpack.c.b16 %v579, %v571
    %v676 = vpack.c.b16 %v580, %v572
    %v677 = vpack.c.b16 %v581, %v573
    %v678 = vpack.c.b16 %v582, %v574
    %v679 = vpack.c.b16 %v583, %v575
    %v680 = vpack.c.b16 %v584, %v576
    %v681 = vpack.c.b16 %v585, %v577
    %v682 = vpack.c.b16 %v594, %v586
    %v683 = vpack.c.b16 %v595, %v587
    %v684 = vpack.c.b16 %v596, %v588
    %v685 = vpack.c.b16 %v597, %v589
    %v686 = vpack.c.b16 %v598, %v590
    %v687 = vpack.c.b16 %v599, %v591
    %v688 = vpack.c.b16 %v600, %v592
    %v689 = vpack.c.b16 %v601, %v593
    %v690 = vpack.c.b16 %v610, %v602
    %v691 = vpack.c.b16 %v611, %v603
    %v692 = vpack.c.b16 %v612, %v604
    %v693 = vpack.c.b16 %v613, %v605
    %v694 = vpack.c.b16 %v614, %v606
    %v695 = vpack.c.b16 %v615, %v607
    %v696 = vpack.c.b16 %v616, %v608
    %v697 = vpack.c.b16 %v617, %v609
    %v698 = vpack.c.b16 %v626, %v618
    %v699 = vpack.c.b16 %v627, %v619
    %v700 = vpack.c.b16 %v628, %v620
    %v701 = vpack.c.b16 %v629, %v621
    %v702 = vpack.c.b16 %v630, %v622
    %v703 = vpack.c.b16 %v631, %v623
    %v704 = vpack.c.b16 %v632, %v624
    %v705 = vpack.c.b16 %v633, %v625
    %v706 = vpack.c.b16 %v642, %v634
    %v707 = vpack.c.b16 %v643, %v635
    %v708 = vpack.c.b16 %v644, %v636
    %v709 = vpack.c.b16 %v645, %v637
    %v710 = vpack.c.b16 %v646, %v638
    %v711 = vpack.c.b16 %v647, %v639
    %v712 = vpack.c.b16 %v648, %v640
    %v713 = vpack.c.b16 %v649, %v641
    %778 = vmatprep.subr.bf16.mxu0 %v707
    %779 = vmatpush1.bf16.msra.mxu0 %v706
    %780 = vmatprep.subr.bf16.mxu0 %v699
    %781 = vmatpush1.bf16.msra.mxu0 %v698
    %782 = vmatprep.subr.bf16.mxu0 %v691
    %783 = vmatpush1.bf16.msra.mxu0 %v690
    %784 = vmatprep.subr.bf16.mxu0 %v683
    %785 = vmatpush1.bf16.msra.mxu0 %v682
    %786 = vmatprep.subr.bf16.mxu0 %v675
    %787 = vmatpush1.bf16.msra.mxu0 %v674
    %788 = vmatprep.subr.bf16.mxu0 %v667
    %789 = vmatpush1.bf16.msra.mxu0 %v666
    %790 = vmatprep.subr.bf16.mxu0 %v659
    %791 = vmatpush1.bf16.msra.mxu0 %v658
    %792 = vmatprep.subr.bf16.mxu0 %v651
    %793 = vmatpush1.bf16.msra.mxu0 %v650
    %794 = vmatprep.subr.bf16.mxu0 0
    %795 = vmatpush2.bf16.msra.mxu0 0
    %796 = vmatprep.subr.bf16.mxu0 0
    %797 = vmatpush2.bf16.msra.mxu0 0
    %798 = vmatprep.subr.bf16.mxu0 0
    %799 = vmatpush2.bf16.msra.mxu0 0
    %800 = vmatprep.subr.bf16.mxu0 0
    %801 = vmatpush2.bf16.msra.mxu0 0
    %802 = vmatprep.subr.bf16.mxu0 0
    %803 = vmatpush2.bf16.msra.mxu0 0
    %804 = vmatprep.subr.bf16.mxu0 0
    %805 = vmatpush2.bf16.msra.mxu0 0
    %806 = vmatprep.subr.bf16.mxu0 0
    %807 = vmatpush2.bf16.msra.mxu0 0
    %808 = vmatprep.subr.bf16.mxu0 0
    %809 = vmatpush2.bf16.msra.mxu0 0
    %810 = vmatprep.mubr.bf16.mxu0 0
    %811 = vmatmul.mubr.bf16.gmra.mxu0 %v348
    %v812 = vpop.f32.mrf.mxu0
    %v813 = vadd.f32 %v421, %v812
    %v814 = vpop.f32.mrf.mxu0
    %v815 = vadd.f32 %v425, %v814
    %v816 = vpop.f32.mrf.mxu0
    %v817 = vadd.f32 %v421, %v816
    %v818 = vpop.f32.mrf.mxu0
    %v819 = vadd.f32 %v425, %v818
    %820 = vmatprep.mubr.bf16.mxu0 0
    %821 = vmatmul.mubr.bf16.gmra.mxu0 %v349
    %v822 = vpop.f32.mrf.mxu0
    %v823 = vadd.f32 %v421, %v822
    %v824 = vpop.f32.mrf.mxu0
    %v825 = vadd.f32 %v425, %v824
    %v826 = vpop.f32.mrf.mxu0
    %v827 = vadd.f32 %v421, %v826
    %v828 = vpop.f32.mrf.mxu0
    %v829 = vadd.f32 %v425, %v828
    %830 = vmatprep.mubr.bf16.mxu0 0
    %831 = vmatmul.mubr.bf16.gmra.mxu0 %v350
    %v832 = vpop.f32.mrf.mxu0
    %v833 = vadd.f32 %v421, %v832
    %v834 = vpop.f32.mrf.mxu0
    %v835 = vadd.f32 %v425, %v834
    %v836 = vpop.f32.mrf.mxu0
    %v837 = vadd.f32 %v421, %v836
    %v838 = vpop.f32.mrf.mxu0
    %v839 = vadd.f32 %v425, %v838
    %840 = vmatprep.mubr.bf16.mxu0 0
    %841 = vmatmul.mubr.bf16.gmra.mxu0 %v351
    %v842 = vpop.f32.mrf.mxu0
    %v843 = vadd.f32 %v421, %v842
    %v844 = vpop.f32.mrf.mxu0
    %v845 = vadd.f32 %v425, %v844
    %v846 = vpop.f32.mrf.mxu0
    %v847 = vadd.f32 %v421, %v846
    %v848 = vpop.f32.mrf.mxu0
    %v849 = vadd.f32 %v425, %v848
    %850 = vdwg.mxu0
    %851 = vmatprep.subr.bf16.mxu0 %v709
    %852 = vmatpush1.bf16.msra.mxu0 %v708
    %853 = vmatprep.subr.bf16.mxu0 %v701
    %854 = vmatpush1.bf16.msra.mxu0 %v700
    %855 = vmatprep.subr.bf16.mxu0 %v693
    %856 = vmatpush1.bf16.msra.mxu0 %v692
    %857 = vmatprep.subr.bf16.mxu0 %v685
    %858 = vmatpush1.bf16.msra.mxu0 %v684
    %859 = vmatprep.subr.bf16.mxu0 %v677
    %860 = vmatpush1.bf16.msra.mxu0 %v676
    %861 = vmatprep.subr.bf16.mxu0 %v669
    %862 = vmatpush1.bf16.msra.mxu0 %v668
    %863 = vmatprep.subr.bf16.mxu0 %v661
    %864 = vmatpush1.bf16.msra.mxu0 %v660
    %865 = vmatprep.subr.bf16.mxu0 %v653
    %866 = vmatpush1.bf16.msra.mxu0 %v652
    %867 = vmatprep.subr.bf16.mxu0 0
    %868 = vmatpush2.bf16.msra.mxu0 0
    %869 = vmatprep.subr.bf16.mxu0 0
    %870 = vmatpush2.bf16.msra.mxu0 0
    %871 = vmatprep.subr.bf16.mxu0 0
    %872 = vmatpush2.bf16.msra.mxu0 0
    %873 = vmatprep.subr.bf16.mxu0 0
    %874 = vmatpush2.bf16.msra.mxu0 0
    %875 = vmatprep.subr.bf16.mxu0 0
    %876 = vmatpush2.bf16.msra.mxu0 0
    %877 = vmatprep.subr.bf16.mxu0 0
    %878 = vmatpush2.bf16.msra.mxu0 0
    %879 = vmatprep.subr.bf16.mxu0 0
    %880 = vmatpush2.bf16.msra.mxu0 0
    %881 = vmatprep.subr.bf16.mxu0 0
    %882 = vmatpush2.bf16.msra.mxu0 0
    %883 = vmatprep.mubr.bf16.mxu0 0
    %884 = vmatmul.mubr.bf16.gmra.mxu0 %v348
    %v885 = vpop.f32.mrf.mxu0
    %v886 = vadd.f32 %v429, %v885
    %v887 = vpop.f32.mrf.mxu0
    %v888 = vadd.f32 %v433, %v887
    %v889 = vpop.f32.mrf.mxu0
    %v890 = vadd.f32 %v429, %v889
    %v891 = vpop.f32.mrf.mxu0
    %v892 = vadd.f32 %v433, %v891
    %893 = vmatprep.mubr.bf16.mxu0 0
    %894 = vmatmul.mubr.bf16.gmra.mxu0 %v349
    %v895 = vpop.f32.mrf.mxu0
    %v896 = vadd.f32 %v429, %v895
    %v897 = vpop.f32.mrf.mxu0
    %v898 = vadd.f32 %v433, %v897
    %v899 = vpop.f32.mrf.mxu0
    %v900 = vadd.f32 %v429, %v899
    %v901 = vpop.f32.mrf.mxu0
    %v902 = vadd.f32 %v433, %v901
    %903 = vmatprep.mubr.bf16.mxu0 0
    %904 = vmatmul.mubr.bf16.gmra.mxu0 %v350
    %v905 = vpop.f32.mrf.mxu0
    %v906 = vadd.f32 %v429, %v905
    %v907 = vpop.f32.mrf.mxu0
    %v908 = vadd.f32 %v433, %v907
    %v909 = vpop.f32.mrf.mxu0
    %v910 = vadd.f32 %v429, %v909
    %v911 = vpop.f32.mrf.mxu0
    %v912 = vadd.f32 %v433, %v911
    %913 = vmatprep.mubr.bf16.mxu0 0
    %914 = vmatmul.mubr.bf16.gmra.mxu0 %v351
    %v915 = vpop.f32.mrf.mxu0
    %v916 = vadd.f32 %v429, %v915
    %v917 = vpop.f32.mrf.mxu0
    %v918 = vadd.f32 %v433, %v917
    %v919 = vpop.f32.mrf.mxu0
    %v920 = vadd.f32 %v429, %v919
    %v921 = vpop.f32.mrf.mxu0
    %v922 = vadd.f32 %v433, %v921
    %923 = vdwg.mxu0
    %924 = vmatprep.subr.bf16.mxu0 %v711
    %925 = vmatpush1.bf16.msra.mxu0 %v710
    %926 = vmatprep.subr.bf16.mxu0 %v703
    %927 = vmatpush1.bf16.msra.mxu0 %v702
    %928 = vmatprep.subr.bf16.mxu0 %v695
    %929 = vmatpush1.bf16.msra.mxu0 %v694
    %930 = vmatprep.subr.bf16.mxu0 %v687
    %931 = vmatpush1.bf16.msra.mxu0 %v686
    %932 = vmatprep.subr.bf16.mxu0 %v679
    %933 = vmatpush1.bf16.msra.mxu0 %v678
    %934 = vmatprep.subr.bf16.mxu0 %v671
    %935 = vmatpush1.bf16.msra.mxu0 %v670
    %936 = vmatprep.subr.bf16.mxu0 %v663
    %937 = vmatpush1.bf16.msra.mxu0 %v662
    %938 = vmatprep.subr.bf16.mxu0 %v655
    %939 = vmatpush1.bf16.msra.mxu0 %v654
    %940 = vmatprep.subr.bf16.mxu0 0
    %941 = vmatpush2.bf16.msra.mxu0 0
    %942 = vmatprep.subr.bf16.mxu0 0
    %943 = vmatpush2.bf16.msra.mxu0 0
    %944 = vmatprep.subr.bf16.mxu0 0
    %945 = vmatpush2.bf16.msra.mxu0 0
    %946 = vmatprep.subr.bf16.mxu0 0
    %947 = vmatpush2.bf16.msra.mxu0 0
    %948 = vmatprep.subr.bf16.mxu0 0
    %949 = vmatpush2.bf16.msra.mxu0 0
    %950 = vmatprep.subr.bf16.mxu0 0
    %951 = vmatpush2.bf16.msra.mxu0 0
    %952 = vmatprep.subr.bf16.mxu0 0
    %953 = vmatpush2.bf16.msra.mxu0 0
    %954 = vmatprep.subr.bf16.mxu0 0
    %955 = vmatpush2.bf16.msra.mxu0 0
    %956 = vmatprep.mubr.bf16.mxu0 0
    %957 = vmatmul.mubr.bf16.gmra.mxu0 %v348
    %v958 = vpop.f32.mrf.mxu0
    %v959 = vadd.f32 %v437, %v958
    %v960 = vpop.f32.mrf.mxu0
    %v961 = vadd.f32 %v441, %v960
    %v962 = vpop.f32.mrf.mxu0
    %v963 = vadd.f32 %v437, %v962
    %v964 = vpop.f32.mrf.mxu0
    %v965 = vadd.f32 %v441, %v964
    %966 = vmatprep.mubr.bf16.mxu0 0
    %967 = vmatmul.mubr.bf16.gmra.mxu0 %v349
    %v968 = vpop.f32.mrf.mxu0
    %v969 = vadd.f32 %v437, %v968
    %v970 = vpop.f32.mrf.mxu0
    %v971 = vadd.f32 %v441, %v970
    %v972 = vpop.f32.mrf.mxu0
    %v973 = vadd.f32 %v437, %v972
    %v974 = vpop.f32.mrf.mxu0
    %v975 = vadd.f32 %v441, %v974
    %976 = vmatprep.mubr.bf16.mxu0 0
    %977 = vmatmul.mubr.bf16.gmra.mxu0 %v350
    %v978 = vpop.f32.mrf.mxu0
    %v979 = vadd.f32 %v437, %v978
    %v980 = vpop.f32.mrf.mxu0
    %v981 = vadd.f32 %v441, %v980
    %v982 = vpop.f32.mrf.mxu0
    %v983 = vadd.f32 %v437, %v982
    %v984 = vpop.f32.mrf.mxu0
    %v985 = vadd.f32 %v441, %v984
    %986 = vmatprep.mubr.bf16.mxu0 0
    %987 = vmatmul.mubr.bf16.gmra.mxu0 %v351
    %v988 = vpop.f32.mrf.mxu0
    %v989 = vadd.f32 %v437, %v988
    %v990 = vpop.f32.mrf.mxu0
    %v991 = vadd.f32 %v441, %v990
    %v992 = vpop.f32.mrf.mxu0
    %v993 = vadd.f32 %v437, %v992
    %v994 = vpop.f32.mrf.mxu0
    %v995 = vadd.f32 %v441, %v994
    %996 = vdwg.mxu0
    %997 = vmatprep.subr.bf16.mxu0 %v713
    %998 = vmatpush1.bf16.msra.mxu0 %v712
    %999 = vmatprep.subr.bf16.mxu0 %v705
    %1000 = vmatpush1.bf16.msra.mxu0 %v704
    %1001 = vmatprep.subr.bf16.mxu0 %v697
    %1002 = vmatpush1.bf16.msra.mxu0 %v696
    %1003 = vmatprep.subr.bf16.mxu0 %v689
    %1004 = vmatpush1.bf16.msra.mxu0 %v688
    %1005 = vmatprep.subr.bf16.mxu0 %v681
    %1006 = vmatpush1.bf16.msra.mxu0 %v680
    %1007 = vmatprep.subr.bf16.mxu0 %v673
    %1008 = vmatpush1.bf16.msra.mxu0 %v672
    %1009 = vmatprep.subr.bf16.mxu0 %v665
    %1010 = vmatpush1.bf16.msra.mxu0 %v664
    %1011 = vmatprep.subr.bf16.mxu0 %v657
    %1012 = vmatpush1.bf16.msra.mxu0 %v656
    %1013 = vmatprep.subr.bf16.mxu0 0
    %1014 = vmatpush2.bf16.msra.mxu0 0
    %1015 = vmatprep.subr.bf16.mxu0 0
    %1016 = vmatpush2.bf16.msra.mxu0 0
    %1017 = vmatprep.subr.bf16.mxu0 0
    %1018 = vmatpush2.bf16.msra.mxu0 0
    %1019 = vmatprep.subr.bf16.mxu0 0
    %1020 = vmatpush2.bf16.msra.mxu0 0
    %1021 = vmatprep.subr.bf16.mxu0 0
    %1022 = vmatpush2.bf16.msra.mxu0 0
    %1023 = vmatprep.subr.bf16.mxu0 0
    %1024 = vmatpush2.bf16.msra.mxu0 0
    %1025 = vmatprep.subr.bf16.mxu0 0
    %1026 = vmatpush2.bf16.msra.mxu0 0
    %1027 = vmatprep.subr.bf16.mxu0 0
    %1028 = vmatpush2.bf16.msra.mxu0 0
    %1029 = vmatprep.mubr.bf16.mxu0 0
    %1030 = vmatmul.mubr.bf16.gmra.mxu0 %v348
    %v1031 = vpop.f32.mrf.mxu0
    %v1032 = vadd.f32 %v445, %v1031
    %v1033 = vpop.f32.mrf.mxu0
    %v1034 = vadd.f32 %v449, %v1033
    %v1035 = vpop.f32.mrf.mxu0
    %v1036 = vadd.f32 %v445, %v1035
    %v1037 = vpop.f32.mrf.mxu0
    %v1038 = vadd.f32 %v449, %v1037
    %1039 = vmatprep.mubr.bf16.mxu0 0
    %1040 = vmatmul.mubr.bf16.gmra.mxu0 %v349
    %v1041 = vpop.f32.mrf.mxu0
    %v1042 = vadd.f32 %v445, %v1041
    %v1043 = vpop.f32.mrf.mxu0
    %v1044 = vadd.f32 %v449, %v1043
    %v1045 = vpop.f32.mrf.mxu0
    %v1046 = vadd.f32 %v445, %v1045
    %v1047 = vpop.f32.mrf.mxu0
    %v1048 = vadd.f32 %v449, %v1047
    %1049 = vmatprep.mubr.bf16.mxu0 0
    %1050 = vmatmul.mubr.bf16.gmra.mxu0 %v350
    %v1051 = vpop.f32.mrf.mxu0
    %v1052 = vadd.f32 %v445, %v1051
    %v1053 = vpop.f32.mrf.mxu0
    %v1054 = vadd.f32 %v449, %v1053
    %v1055 = vpop.f32.mrf.mxu0
    %v1056 = vadd.f32 %v445, %v1055
    %v1057 = vpop.f32.mrf.mxu0
    %v1058 = vadd.f32 %v449, %v1057
    %1059 = vmatprep.mubr.bf16.mxu0 0
    %1060 = vmatmul.mubr.bf16.gmra.mxu0 %v351
    %v1061 = vpop.f32.mrf.mxu0
    %v1062 = vadd.f32 %v445, %v1061
    %v1063 = vpop.f32.mrf.mxu0
    %v1064 = vadd.f32 %v449, %v1063
    %v1065 = vpop.f32.mrf.mxu0
    %v1066 = vadd.f32 %v445, %v1065
    %v1067 = vpop.f32.mrf.mxu0
    %v1068 = vadd.f32 %v449, %v1067
    %1069 = vdwg.mxu0
    %v1070 = vmax.f32 %v813, 0.0
    %v1071 = vmax.f32 %v815, 0.0
    %v1072 = vmax.f32 %v886, 0.0
    %v1073 = vmax.f32 %v888, 0.0
    %v1074 = vmax.f32 %v959, 0.0
    %v1075 = vmax.f32 %v961, 0.0
    %v1076 = vmax.f32 %v1032, 0.0
    %v1077 = vmax.f32 %v1034, 0.0
    %v1078 = vmax.f32 %v817, 0.0
    %v1079 = vmax.f32 %v819, 0.0
    %v1080 = vmax.f32 %v890, 0.0
    %v1081 = vmax.f32 %v892, 0.0
    %v1082 = vmax.f32 %v963, 0.0
    %v1083 = vmax.f32 %v965, 0.0
    %v1084 = vmax.f32 %v1036, 0.0
    %v1085 = vmax.f32 %v1038, 0.0
    %v1086 = vmax.f32 %v823, 0.0
    %v1087 = vmax.f32 %v825, 0.0
    %v1088 = vmax.f32 %v896, 0.0
    %v1089 = vmax.f32 %v898, 0.0
    %v1090 = vmax.f32 %v969, 0.0
    %v1091 = vmax.f32 %v971, 0.0
    %v1092 = vmax.f32 %v1042, 0.0
    %v1093 = vmax.f32 %v1044, 0.0
    %v1094 = vmax.f32 %v827, 0.0
    %v1095 = vmax.f32 %v829, 0.0
    %v1096 = vmax.f32 %v900, 0.0
    %v1097 = vmax.f32 %v902, 0.0
    %v1098 = vmax.f32 %v973, 0.0
    %v1099 = vmax.f32 %v975, 0.0
    %v1100 = vmax.f32 %v1046, 0.0
    %v1101 = vmax.f32 %v1048, 0.0
    %v1102 = vmax.f32 %v833, 0.0
    %v1103 = vmax.f32 %v835, 0.0
    %v1104 = vmax.f32 %v906, 0.0
    %v1105 = vmax.f32 %v908, 0.0
    %v1106 = vmax.f32 %v979, 0.0
    %v1107 = vmax.f32 %v981, 0.0
    %v1108 = vmax.f32 %v1052, 0.0
    %v1109 = vmax.f32 %v1054, 0.0
    %v1110 = vmax.f32 %v837, 0.0
    %v1111 = vmax.f32 %v839, 0.0
    %v1112 = vmax.f32 %v910, 0.0
    %v1113 = vmax.f32 %v912, 0.0
    %v1114 = vmax.f32 %v983, 0.0
    %v1115 = vmax.f32 %v985, 0.0
    %v1116 = vmax.f32 %v1056, 0.0
    %v1117 = vmax.f32 %v1058, 0.0
    %v1118 = vmax.f32 %v843, 0.0
    %v1119 = vmax.f32 %v845, 0.0
    %v1120 = vmax.f32 %v916, 0.0
    %v1121 = vmax.f32 %v918, 0.0
    %v1122 = vmax.f32 %v989, 0.0
    %v1123 = vmax.f32 %v991, 0.0
    %v1124 = vmax.f32 %v1062, 0.0
    %v1125 = vmax.f32 %v1064, 0.0
    %v1126 = vmax.f32 %v847, 0.0
    %v1127 = vmax.f32 %v849, 0.0
    %v1128 = vmax.f32 %v920, 0.0
    %v1129 = vmax.f32 %v922, 0.0
    %v1130 = vmax.f32 %v993, 0.0
    %v1131 = vmax.f32 %v995, 0.0
    %v1132 = vmax.f32 %v1066, 0.0
    %v1133 = vmax.f32 %v1068, 0.0
    %v1134 = vmax.f32 %v1070, %v1078
    %v1135 = vmax.f32 %v1134, %v1086
    %v1136 = vmax.f32 %v1135, %v1094
    %v1137 = vrot.slane %v1136, 4
    %v1138 = vmax.f32 %v1136, %v1137
    %v1139 = vrot.slane %v1138, 2
    %v1140 = vmax.f32 %v1138, %v1139
    %v1141 = vrot.slane %v1140, 1
    %v1142 = vmax.f32 %v1140, %v1141
    %v1143 = vmax.f32 %v1071, %v1079
    %v1144 = vmax.f32 %v1143, %v1087
    %v1145 = vmax.f32 %v1144, %v1095
    %v1146 = vrot.slane %v1145, 4
    %v1147 = vmax.f32 %v1145, %v1146
    %v1148 = vrot.slane %v1147, 2
    %v1149 = vmax.f32 %v1147, %v1148
    %v1150 = vrot.slane %v1149, 1
    %v1151 = vmax.f32 %v1149, %v1150
    %v1152 = vmax.f32 %v1072, %v1080
    %v1153 = vmax.f32 %v1152, %v1088
    %v1154 = vmax.f32 %v1153, %v1096
    %v1155 = vrot.slane %v1154, 4
    %v1156 = vmax.f32 %v1154, %v1155
    %v1157 = vrot.slane %v1156, 2
    %v1158 = vmax.f32 %v1156, %v1157
    %v1159 = vrot.slane %v1158, 1
    %v1160 = vmax.f32 %v1158, %v1159
    %v1161 = vmax.f32 %v1073, %v1081
    %v1162 = vmax.f32 %v1161, %v1089
    %v1163 = vmax.f32 %v1162, %v1097
    %v1164 = vrot.slane %v1163, 4
    %v1165 = vmax.f32 %v1163, %v1164
    %v1166 = vrot.slane %v1165, 2
    %v1167 = vmax.f32 %v1165, %v1166
    %v1168 = vrot.slane %v1167, 1
    %v1169 = vmax.f32 %v1167, %v1168
    %v1170 = vmax.f32 %v1074, %v1082
    %v1171 = vmax.f32 %v1170, %v1090
    %v1172 = vmax.f32 %v1171, %v1098
    %v1173 = vrot.slane %v1172, 4
    %v1174 = vmax.f32 %v1172, %v1173
    %v1175 = vrot.slane %v1174, 2
    %v1176 = vmax.f32 %v1174, %v1175
    %v1177 = vrot.slane %v1176, 1
    %v1178 = vmax.f32 %v1176, %v1177
    %v1179 = vmax.f32 %v1075, %v1083
    %v1180 = vmax.f32 %v1179, %v1091
    %v1181 = vmax.f32 %v1180, %v1099
    %v1182 = vrot.slane %v1181, 4
    %v1183 = vmax.f32 %v1181, %v1182
    %v1184 = vrot.slane %v1183, 2
    %v1185 = vmax.f32 %v1183, %v1184
    %v1186 = vrot.slane %v1185, 1
    %v1187 = vmax.f32 %v1185, %v1186
    %v1188 = vmax.f32 %v1076, %v1084
    %v1189 = vmax.f32 %v1188, %v1092
    %v1190 = vmax.f32 %v1189, %v1100
    %v1191 = vrot.slane %v1190, 4
    %v1192 = vmax.f32 %v1190, %v1191
    %v1193 = vrot.slane %v1192, 2
    %v1194 = vmax.f32 %v1192, %v1193
    %v1195 = vrot.slane %v1194, 1
    %v1196 = vmax.f32 %v1194, %v1195
    %v1197 = vmax.f32 %v1077, %v1085
    %v1198 = vmax.f32 %v1197, %v1093
    %v1199 = vmax.f32 %v1198, %v1101
    %v1200 = vrot.slane %v1199, 4
    %v1201 = vmax.f32 %v1199, %v1200
    %v1202 = vrot.slane %v1201, 2
    %v1203 = vmax.f32 %v1201, %v1202
    %v1204 = vrot.slane %v1203, 1
    %v1205 = vmax.f32 %v1203, %v1204
    %v1206 = vmax.f32 %v1102, %v1110
    %v1207 = vmax.f32 %v1206, %v1118
    %v1208 = vmax.f32 %v1207, %v1126
    %v1209 = vrot.slane %v1208, 4
    %v1210 = vmax.f32 %v1208, %v1209
    %v1211 = vrot.slane %v1210, 2
    %v1212 = vmax.f32 %v1210, %v1211
    %v1213 = vrot.slane %v1212, 1
    %v1214 = vmax.f32 %v1212, %v1213
    %v1215 = vmax.f32 %v1103, %v1111
    %v1216 = vmax.f32 %v1215, %v1119
    %v1217 = vmax.f32 %v1216, %v1127
    %v1218 = vrot.slane %v1217, 4
    %v1219 = vmax.f32 %v1217, %v1218
    %v1220 = vrot.slane %v1219, 2
    %v1221 = vmax.f32 %v1219, %v1220
    %v1222 = vrot.slane %v1221, 1
    %v1223 = vmax.f32 %v1221, %v1222
    %v1224 = vmax.f32 %v1104, %v1112
    %v1225 = vmax.f32 %v1224, %v1120
    %v1226 = vmax.f32 %v1225, %v1128
    %v1227 = vrot.slane %v1226, 4
    %v1228 = vmax.f32 %v1226, %v1227
    %v1229 = vrot.slane %v1228, 2
    %v1230 = vmax.f32 %v1228, %v1229
    %v1231 = vrot.slane %v1230, 1
    %v1232 = vmax.f32 %v1230, %v1231
    %v1233 = vmax.f32 %v1105, %v1113
    %v1234 = vmax.f32 %v1233, %v1121
    %v1235 = vmax.f32 %v1234, %v1129
    %v1236 = vrot.slane %v1235, 4
    %v1237 = vmax.f32 %v1235, %v1236
    %v1238 = vrot.slane %v1237, 2
    %v1239 = vmax.f32 %v1237, %v1238
    %v1240 = vrot.slane %v1239, 1
    %v1241 = vmax.f32 %v1239, %v1240
    %v1242 = vmax.f32 %v1106, %v1114
    %v1243 = vmax.f32 %v1242, %v1122
    %v1244 = vmax.f32 %v1243, %v1130
    %v1245 = vrot.slane %v1244, 4
    %v1246 = vmax.f32 %v1244, %v1245
    %v1247 = vrot.slane %v1246, 2
    %v1248 = vmax.f32 %v1246, %v1247
    %v1249 = vrot.slane %v1248, 1
    %v1250 = vmax.f32 %v1248, %v1249
    %v1251 = vmax.f32 %v1107, %v1115
    %v1252 = vmax.f32 %v1251, %v1123
    %v1253 = vmax.f32 %v1252, %v1131
    %v1254 = vrot.slane %v1253, 4
    %v1255 = vmax.f32 %v1253, %v1254
    %v1256 = vrot.slane %v1255, 2
    %v1257 = vmax.f32 %v1255, %v1256
    %v1258 = vrot.slane %v1257, 1
    %v1259 = vmax.f32 %v1257, %v1258
    %v1260 = vmax.f32 %v1108, %v1116
    %v1261 = vmax.f32 %v1260, %v1124
    %v1262 = vmax.f32 %v1261, %v1132
    %v1263 = vrot.slane %v1262, 4
    %v1264 = vmax.f32 %v1262, %v1263
    %v1265 = vrot.slane %v1264, 2
    %v1266 = vmax.f32 %v1264, %v1265
    %v1267 = vrot.slane %v1266, 1
    %v1268 = vmax.f32 %v1266, %v1267
    %v1269 = vmax.f32 %v1109, %v1117
    %v1270 = vmax.f32 %v1269, %v1125
    %v1271 = vmax.f32 %v1270, %v1133
    %v1272 = vrot.slane %v1271, 4
    %v1273 = vmax.f32 %v1271, %v1272
    %v1274 = vrot.slane %v1273, 2
    %v1275 = vmax.f32 %v1273, %v1274
    %v1276 = vrot.slane %v1275, 1
    %v1277 = vmax.f32 %v1275, %v1276
    %v1294 = vcombine.low %v1142, %v1151
    %v1295 = vcombine.low %v1160, %v1169
    %v1297 = vunpack.c.l.s4 1983009808
    %v1298 = vunpack.c.0.s8 %v1297
    %v1299 = vlaneseq
    %v1300 = vshrl.u32 %v1299, 7
    %v1301 = vsub.s32 %v1298, %v1300
    %v1302 = vrot.slane %v1294, %v1301
    %v1304 = vunpack.c.l.s4 1983009808
    %v1305 = vunpack.c.0.s8 %v1304
    %v1306 = vlaneseq
    %v1307 = vshrl.u32 %v1306, 7
    %v1308 = vsub.s32 %v1305, %v1307
    %v1309 = vrot.slane %v1295, %v1308
    %v1310 = vcombine.low %v1302, %v1309
    %v1311 = vcombine.low %v1178, %v1187
    %v1312 = vcombine.low %v1196, %v1205
    %v1314 = vunpack.c.l.s4 1983009808
    %v1315 = vunpack.c.0.s8 %v1314
    %v1316 = vlaneseq
    %v1317 = vshrl.u32 %v1316, 7
    %v1318 = vsub.s32 %v1315, %v1317
    %v1319 = vrot.slane %v1311, %v1318
    %v1321 = vunpack.c.l.s4 1983009808
    %v1322 = vunpack.c.0.s8 %v1321
    %v1323 = vlaneseq
    %v1324 = vshrl.u32 %v1323, 7
    %v1325 = vsub.s32 %v1322, %v1324
    %v1326 = vrot.slane %v1312, %v1325
    %v1327 = vcombine.low %v1319, %v1326
    %v1328 = vcombine.low %v1214, %v1223
    %v1329 = vcombine.low %v1232, %v1241
    %v1331 = vunpack.c.l.s4 1983009808
    %v1332 = vunpack.c.0.s8 %v1331
    %v1333 = vlaneseq
    %v1334 = vshrl.u32 %v1333, 7
    %v1335 = vsub.s32 %v1332, %v1334
    %v1336 = vrot.slane %v1328, %v1335
    %v1338 = vunpack.c.l.s4 1983009808
    %v1339 = vunpack.c.0.s8 %v1338
    %v1340 = vlaneseq
    %v1341 = vshrl.u32 %v1340, 7
    %v1342 = vsub.s32 %v1339, %v1341
    %v1343 = vrot.slane %v1329, %v1342
    %v1344 = vcombine.low %v1336, %v1343
    %v1345 = vcombine.low %v1250, %v1259
    %v1346 = vcombine.low %v1268, %v1277
    %v1348 = vunpack.c.l.s4 1983009808
    %v1349 = vunpack.c.0.s8 %v1348
    %v1350 = vlaneseq
    %v1351 = vshrl.u32 %v1350, 7
    %v1352 = vsub.s32 %v1349, %v1351
    %v1353 = vrot.slane %v1345, %v1352
    %v1355 = vunpack.c.l.s4 1983009808
    %v1356 = vunpack.c.0.s8 %v1355
    %v1357 = vlaneseq
    %v1358 = vshrl.u32 %v1357, 7
    %v1359 = vsub.s32 %v1356, %v1358
    %v1360 = vrot.slane %v1346, %v1359
    %v1361 = vcombine.low %v1353, %v1360
    %vm1362 = vcmask 1044484
    %v1363 = vsel %vm1362, %v1310, %v1310
    %vm1364 = vcmask 1046534
    %v1365 = vsel %vm1364, %v1310, %v1363
    %v1366 = vrot.slane %v1344, 7
    %vm1367 = vcmask 1041409
    %v1368 = vsel %vm1367, %v1366, %v1365
    %vm1369 = vcmask 1043459
    %v1370 = vsel %vm1369, %v1366, %v1368
    %vm1371 = vcmask 1045509
    %v1372 = vsel %vm1371, %v1366, %v1370
    %vm1373 = vcmask 1047559
    %v1374 = vsel %vm1373, %v1366, %v1372
    %v1375 = vsel %vm1362, %v1327, %v1327
    %v1376 = vsel %vm1364, %v1327, %v1375
    %v1377 = vrot.slane %v1361, 7
    %v1378 = vsel %vm1367, %v1377, %v1376
    %v1379 = vsel %vm1369, %v1377, %v1378
    %v1380 = vsel %vm1371, %v1377, %v1379
    %v1381 = vsel %vm1373, %v1377, %v1380
    %1384 = vst [vmem:[#allocation10] sm:$0xff] %v1374
    %1385 = vst [vmem:[#allocation10 + $0x8] sm:$0xff] %v1381
    // Predicated region
    $region46: #{tpu_custom_call.1} parent=1 // pred_check
      _
    $region47: #{tpu_custom_call.1} parent=1 // pred_check_branch
      %1387 = sbr.rel (0) target = $region49
    $region48: #{tpu_custom_call.1} parent=1 // pred_region
      %s1389 = ssub.s32 256, 256
      %1390 = vsyncadd [#allocation4], %s1389
      %s1392 = sshll.u32 [#allocation10], 4
      %s1393 = int_to_ptr.vmem [resolvable:$true] %s1392
      %1395 = dma.vmem_to_hbm [thread:$0]  %s1393, 256, %s7, [#allocation4]
    $region49: #{tpu_custom_call.1} parent=1 // pred_fallthru
      _
    // Predicated region
    $region50: #{tpu_custom_call.1} parent=1 // pred_check
      _
    $region51: #{tpu_custom_call.1} parent=1 // pred_check_branch
      %1397 = sbr.rel (0) target = $region53
    $region52: #{tpu_custom_call.1} parent=1 // pred_region
      %1398 = dma.done [#allocation4], 256
    $region53: #{tpu_custom_call.1} parent=1 // pred_fallthru
      _
    %1399 = vsyncpa [#allocation3], 1
    %1400 = vsyncpa [#allocation6], 1
    %1401 = vsyncpa [#allocation9], 1
    %1402 = vsyncpa [#allocation4], 1

</llo_original>
